<compile_context>
chip_gen: v6e
topology: v6e:2x2x1
jax: 0.10.0
libtpu: 0.0.40
codegen_flags: <defaults>
</compile_context>

<pallas_src>
from functools import partial

import jax
import jax.numpy as jnp
from jax import lax
from jax.experimental import pallas as pl
from jax.experimental.pallas import tpu as pltpu

_BN_EPS = 1e-5
_CHUNK = 256          # rows per in-kernel streaming chunk in the fused kernel


# --------------------------------------------------------------------------
# Kernels
# --------------------------------------------------------------------------
def _bn_fused_kernel(x_ref, gamma_ref, beta_ref, o_ref, *, eps):
    """Single-pass BN: full N resident for one (ragged) channel tile.

    Statistics and the normalization are streamed over row chunks with
    lax.fori_loop so no (N, TC)-sized f32 temporaries are live — only the
    pipelined in/out blocks plus a few (chunk, TC) chunks. Total HBM traffic:
    1 read + 1 write of x.
    """
    n, tc = x_ref.shape                      # static
    chunk = min(_CHUNK, n)
    n_main = (n // chunk) * chunk
    n_rem = n - n_main
    n_chunks = n_main // chunk
    inv_n = 1.0 / n

    def load(start, size):
        return x_ref[pl.ds(start, size), :].astype(jnp.float32)

    # Pass 1 (VMEM-resident): per-channel sum -> mean (f32 accumulation).
    def sum_body(i, acc):
        start = pl.multiple_of(i * chunk, chunk)
        return acc + jnp.sum(load(start, chunk), axis=0, keepdims=True)

    s = lax.fori_loop(0, n_chunks, sum_body, jnp.zeros((1, tc), jnp.float32))
    if n_rem:
        s = s + jnp.sum(load(n_main, n_rem), axis=0, keepdims=True)
    mean = s * inv_n

    # Pass 2 (VMEM-resident): centered per-channel variance (no cancellation).
    def var_body(i, acc):
        start = pl.multiple_of(i * chunk, chunk)
        d = load(start, chunk) - mean
        return acc + jnp.sum(d * d, axis=0, keepdims=True)

    v = lax.fori_loop(0, n_chunks, var_body, jnp.zeros((1, tc), jnp.float32))
    if n_rem:
        d = load(n_main, n_rem) - mean
        v = v + jnp.sum(d * d, axis=0, keepdims=True)
    var = v * inv_n

    inv_std = lax.rsqrt(var + eps)
    scale = gamma_ref[...] * inv_std          # fold affine: y = x*scale + shift
    shift = beta_ref[...] - mean * scale

    # Pass 3 (VMEM-resident): apply, streamed chunk by chunk into the output.
    def apply_body(i, carry):
        start = pl.multiple_of(i * chunk, chunk)
        o_ref[pl.ds(start, chunk), :] = (
            load(start, chunk) * scale + shift).astype(o_ref.dtype)
        return carry

    lax.fori_loop(0, n_chunks, apply_body, 0)
    if n_rem:
        o_ref[pl.ds(n_main, n_rem), :] = (
            load(n_main, n_rem) * scale + shift).astype(o_ref.dtype)


def _stats_kernel(x_ref, sum_ref, sq_ref, shift_ref, *, n_valid, row_tile, num_n):
    """Two-pass path, pass 1: shifted per-channel sums over the N axis.

    Accumulates sum(x - shift) and sum((x - shift)^2) where `shift` is the
    per-channel mean of the first row block, so the wrapper-side
    var = E[d^2] - E[d]^2 does not cancel catastrophically.  OOB-row masking
    is only emitted for the statically-known last (ragged) row block.
    """
    ni = pl.program_id(1)
    x = x_ref[...].astype(jnp.float32)

    @pl.when(ni == 0)
    def _():
        first_rows = min(row_tile, n_valid)            # static
        xf = x
        if first_rows < row_tile:                      # static check
            row = lax.broadcasted_iota(jnp.int32, x.shape, 0)
            xf = jnp.where(row < first_rows, x, 0.0)
        shift_ref[...] = jnp.sum(xf, axis=0, keepdims=True) * (1.0 / first_rows)
        sum_ref[...] = jnp.zeros_like(sum_ref)
        sq_ref[...] = jnp.zeros_like(sq_ref)

    def acc(xv):
        d = xv - shift_ref[...]
        sum_ref[...] += jnp.sum(d, axis=0, keepdims=True)
        sq_ref[...] += jnp.sum(d * d, axis=0, keepdims=True)

    if n_valid % row_tile != 0:                        # static: ragged last block
        last = num_n - 1

        @pl.when(ni == last)
        def _():
            row = ni * row_tile + lax.broadcasted_iota(jnp.int32, x.shape, 0)
            acc(jnp.where(row < n_valid, x, shift_ref[...]))   # OOB rows -> d = 0

        @pl.when(ni != last)
        def _():
            acc(x)
    else:
        acc(x)


def _scale_shift_kernel(x_ref, scale_ref, shift_ref, o_ref):
    """Two-pass path, pass 2: y = x * scale + shift."""
    o_ref[...] = (x_ref[...].astype(jnp.float32) * scale_ref[...]
                  + shift_ref[...]).astype(o_ref.dtype)


def _bias_kernel(x_ref, bias_ref, o_ref):
    """use_bn=False: y = x + bias (no scale operand, no multiply)."""
    o_ref[...] = (x_ref[...].astype(jnp.float32) + bias_ref[...]).astype(o_ref.dtype)


# --------------------------------------------------------------------------
# Tile-size / VMEM helpers
# --------------------------------------------------------------------------
def _vmem_capacity_bytes():
    try:
        info = pltpu.get_tpu_info()
        for name in ("vmem_capacity_bytes", "vmem_size_bytes", "vmem_bytes"):
            cap = int(getattr(info, name, 0) or 0)
            if cap > 0:
                return cap
    except Exception:
        pass
    return 64 * 1024 * 1024       # conservative: v7x per-TC physical VMEM


def _fused_vmem_bytes(n, tc, in_b, out_b):
    # Double-buffered (N, tc) in/out blocks + a few (chunk, tc) f32 chunk temps.
    chunk = min(_CHUNK, n)
    return 2 * n * tc * (in_b + out_b) + 6 * chunk * tc * 4 + (64 << 10)


def _fused_channel_tile(n, c, in_b, out_b, budget):
    def fits(tc):
        return _fused_vmem_bytes(n, tc, in_b, out_b) <= budget

    if c <= 128:
        return c if fits(c) else None
    # Lane-dense (multiple-of-128) channel tiles; keep >= 2 of them whenever
    # C >= 256 so both v7x TensorCores get work on the "parallel" channel axis.
    tc = max(128, min(512, 128 * (c // 256)))
    while tc >= 128:
        if fits(tc):
            return tc
        tc -= 128
    return None


def _wide_channel_tile(c):
    # Full channel width (fully contiguous DMA rows) up to 512 lanes, else
    # 512-wide lane-dense strips (vs. narrow 128-wide strided bursts).
    return c if c <= 512 else 512


def _validate_channel_tile(tc, c):
    tc = int(tc)
    if c <= 128 or tc >= c:
        return c
    return max(128, (tc // 128) * 128)


def _validate_row_tile(rt, n, align):
    rt = int(rt)
    if rt >= n or n <= align:
        return n
    return max(align, (rt // align) * align)


def _pick_row_tile(n, per_row_bytes, budget, align, override=None, min_tiles=1):
    if override is not None:
        return _validate_row_tile(override, n, align)
    if n <= align:
        return n
    rows = budget // max(per_row_bytes, 1)
    if min_tiles > 1:
        rows = min(rows, -(-n // min_tiles))   # keep >= min_tiles row tiles
    if rows >= n:
        return n
    return max(align, (rows // align) * align)


# --------------------------------------------------------------------------
# pallas_call wrappers
# --------------------------------------------------------------------------
def _elementwise_call(kernel, x, params, out_dtype, tn, tc, vmem_limit):
    n, c = x.shape
    grid = (pl.cdiv(c, tc), pl.cdiv(n, tn))
    in_specs = [pl.BlockSpec((tn, tc), lambda ci, ri: (ri, ci))]
    in_specs += [pl.BlockSpec((1, tc), lambda ci, ri: (0, ci)) for _ in params]
    return pl.pallas_call(
        kernel,
        out_shape=jax.ShapeDtypeStruct((n, c), out_dtype),
        grid=grid,
        in_specs=in_specs,
        out_specs=pl.BlockSpec((tn, tc), lambda ci, ri: (ri, ci)),
        compiler_params=pltpu.CompilerParams(
            dimension_semantics=("parallel", "parallel"),
            vmem_limit_bytes=vmem_limit,
        ),
    )(x, *params)


def batch_norm_block(x, *, use_bn, gamma=None, beta=None, bias=None,
                     eps=_BN_EPS, channel_tile=None, row_tile=None,
                     force_two_pass=False):
    """JAX/Pallas equivalent of BatchNormBlock.forward for x of shape (N, C)."""
    N, C = x.shape
    out_dtype = x.dtype                      # bf16 I/O preserved; stats in f32
    in_b = jnp.dtype(x.dtype).itemsize
    out_b = in_b
    align = 8 * max(1, 4 // in_b)            # f32: 8, bf16: 16, int8/fp8: 32

    cap = _vmem_capacity_bytes()
    # 64 MiB scoped VMEM on 128-MiB parts (v5e/v6e), 48 MiB on v7x (64 MiB VMEM);
    # over-reserving only crowds out neighbouring XLA buffers.
    vmem_limit = int(min(64 << 20, cap * 3 // 4))
    budget = vmem_limit - (2 << 20)          # headroom for params / temporaries

    # ---------------- use_bn = False : y = x + bias ------------------------
    # TODO(synk): in a real model this trivial add should be left to XLA so it
    # fuses with the producing matmul instead of being a standalone pallas_call.
    if not use_bn:
        bias2 = bias.reshape(1, C).astype(jnp.float32)
        tc = (_validate_channel_tile(channel_tile, C) if channel_tile is not None
              else _wide_channel_tile(C))
        num_c = pl.cdiv(C, tc)
        per_row = tc * (2 * in_b + 2 * out_b + 8)
        tn = _pick_row_tile(N, per_row, budget, align, row_tile,
                            min_tiles=2 if num_c == 1 else 1)
        return _elementwise_call(_bias_kernel, x, (bias2,), out_dtype,
                                 tn, tc, vmem_limit)

    # ---------------- use_bn = True -----------------------------------------
    gamma2 = gamma.reshape(1, C).astype(jnp.float32)
    beta2 = beta.reshape(1, C).astype(jnp.float32)

    if channel_tile is not None:
        tc_fused = tc_two = _validate_channel_tile(channel_tile, C)
        if _fused_vmem_bytes(N, tc_fused, in_b, out_b) > budget:
            tc_fused = None
    else:
        tc_fused = _fused_channel_tile(N, C, in_b, out_b, budget)
        tc_two = _wide_channel_tile(C)

    if tc_fused is not None and not force_two_pass:
        # Fused single pass: 1 HBM read + 1 HBM write of x, grid over channels.
        # TODO(synk): with C <= 128 this is a 1-point grid; on v7x only one of
        # the two TensorCores streams HBM (a core_map split over N would fix it).
        num_c = pl.cdiv(C, tc_fused)
        return pl.pallas_call(
            partial(_bn_fused_kernel, eps=eps),
            out_shape=jax.ShapeDtypeStruct((N, C), out_dtype),
            grid=(num_c,),
            in_specs=[
                pl.BlockSpec((N, tc_fused), lambda ci: (0, ci)),
                pl.BlockSpec((1, tc_fused), lambda ci: (0, ci)),
                pl.BlockSpec((1, tc_fused), lambda ci: (0, ci)),
            ],
            out_specs=pl.BlockSpec((N, tc_fused), lambda ci: (0, ci)),
            compiler_params=pltpu.CompilerParams(
                dimension_semantics=("parallel",),
                vmem_limit_bytes=vmem_limit,
            ),
        )(x, gamma2, beta2)

    # -------- two-pass fallback (N too large for a resident (N, tc) block) ---
    tc2 = tc_two
    num_c2 = pl.cdiv(C, tc2)

    # Pass 1: shifted per-channel sums. Output is only (1, tc), so the block
    # cost is ~2x input + f32 temporaries; no artificial row cap.
    per_row_stats = tc2 * (2 * in_b + 12)
    tn_stats = _pick_row_tile(N, per_row_stats, budget, align, row_tile)
    num_n = pl.cdiv(N, tn_stats)

    s, sq, shift = pl.pallas_call(
        partial(_stats_kernel, n_valid=N, row_tile=tn_stats, num_n=num_n),
        out_shape=(jax.ShapeDtypeStruct((1, C), jnp.float32),
                   jax.ShapeDtypeStruct((1, C), jnp.float32),
                   jax.ShapeDtypeStruct((1, C), jnp.float32)),
        grid=(num_c2, num_n),
        in_specs=[pl.BlockSpec((tn_stats, tc2), lambda ci, ri: (ri, ci))],
        out_specs=(pl.BlockSpec((1, tc2), lambda ci, ri: (0, ci)),
                   pl.BlockSpec((1, tc2), lambda ci, ri: (0, ci)),
                   pl.BlockSpec((1, tc2), lambda ci, ri: (0, ci))),
        compiler_params=pltpu.CompilerParams(
            dimension_semantics=("parallel", "arbitrary"),
            vmem_limit_bytes=vmem_limit,
        ),
    )(x)

    inv_n = 1.0 / N
    mean = shift + s * inv_n
    var = jnp.maximum(sq * inv_n - jnp.square(s * inv_n), 0.0)
    inv_std = lax.rsqrt(var + eps)
    scale = gamma2 * inv_std
    offset = beta2 - mean * scale

    # Pass 2: fully "parallel" apply y = x*scale + offset.
    per_row_apply = tc2 * (2 * in_b + 2 * out_b + 8)
    tn_apply = _pick_row_tile(N, per_row_apply, budget, align, row_tile,
                              min_tiles=2 if num_c2 == 1 else 1)
    return _elementwise_call(_scale_shift_kernel, x, (scale, offset), out_dtype,
                             tn_apply, tc2, vmem_limit)


# --------------------------------------------------------------------------
# Reference + tests
# --------------------------------------------------------------------------
def _reference_bn(x, gamma, beta, eps=_BN_EPS):
    x = x.astype(jnp.float32)
    mean = jnp.mean(x, axis=0, keepdims=True)
    var = jnp.mean((x - mean) ** 2, axis=0, keepdims=True)
    return (x - mean) / jnp.sqrt(var + eps) * gamma + beta


if __name__ == "__main__":
    key = jax.random.PRNGKey(0)

    def make_inputs(n, c, tag, mean_shift=0.0):
        kx, kg, kb = jax.random.split(jax.random.fold_in(key, tag), 3)
        x = jax.random.normal(kx, (n, c), dtype=jnp.float32) + mean_shift
        gamma = 1.0 + 0.1 * jax.random.normal(kg, (c,), dtype=jnp.float32)
        beta = 0.1 * jax.random.normal(kb, (c,), dtype=jnp.float32)
        return x, gamma, beta

    def check_bn(n, c, tag, mean_shift=0.0, atol=1e-4, rtol=1e-4, **kw):
        x, gamma, beta = make_inputs(n, c, tag, mean_shift)
        y = batch_norm_block(x, use_bn=True, gamma=gamma, beta=beta, **kw)
        jax.block_until_ready(y)
        ref = _reference_bn(x, gamma[None, :], beta[None, :])
        assert y.shape == (n, c), (y.shape, n, c)
        assert jnp.allclose(y, ref, atol=atol, rtol=rtol), (n, c, kw)

    # 1) tiny D3Feat-like shape: single fused block, C == full lane width.
    check_bn(16, 32, tag=1)

    # 2) C not a multiple of 128: ragged last channel block, no HBM padding.
    check_bn(64, 200, tag=2)

    # 3) same, with N > chunk so the fused kernel's row-chunk tail runs.
    check_bn(300, 200, tag=3)

    # 4) multiple lane-dense channel tiles on the "parallel" grid axis.
    check_bn(64, 256, tag=4, channel_tile=128)

    # 5) forced two-pass path: ragged row tile (72 % 32 != 0) + ragged channel
    #    edge blocks in the stats and apply passes.
    check_bn(72, 200, tag=5, force_two_pass=True, row_tile=32)

    # 6) two-pass path with a large common mean: exercises the shifted
    #    (cancellation-safe) statistics (loose tol — the f32 reference itself
    #    loses precision at this offset).
    check_bn(72, 200, tag=6, force_two_pass=True, row_tile=32,
             mean_shift=20.0, atol=1e-2, rtol=1e-2)

    # 7) bf16 I/O (statistics still accumulated in f32 inside the kernel).
    xb, gb, bb = make_inputs(64, 200, tag=7)
    x_bf16 = xb.astype(jnp.bfloat16)
    y_bf16 = batch_norm_block(x_bf16, use_bn=True, gamma=gb, beta=bb)
    jax.block_until_ready(y_bf16)
    assert y_bf16.dtype == jnp.bfloat16
    ref_bf16 = _reference_bn(x_bf16.astype(jnp.float32), gb[None, :], bb[None, :])
    assert jnp.allclose(y_bf16.astype(jnp.float32), ref_bf16, atol=0.1, rtol=0.1)

    # 8) use_bn=False path: y = x + bias.
    kx, kb = jax.random.split(jax.random.fold_in(key, 8), 2)
    x8 = jax.random.normal(kx, (16, 32), dtype=jnp.float32)
    bias = 0.05 * jax.random.normal(kb, (32,), dtype=jnp.float32)
    y8 = batch_norm_block(x8, use_bn=False, bias=bias)
    jax.block_until_ready(y8)
    assert jnp.allclose(y8, x8 + bias[None, :], atol=1e-6)

    print("KERNEL_OK")
</pallas_src>

<mosaic_0001>
module attributes {stable_mosaic.version = 11 : i64} {
  func.func @_bn_fused_kernel(%arg0: i32, %arg1: memref<16x32xf32, #tpu.memory_space<vmem>>, %arg2: memref<1x32xf32, #tpu.memory_space<vmem>>, %arg3: memref<1x32xf32, #tpu.memory_space<vmem>>, %arg4: memref<16x32xf32, #tpu.memory_space<vmem>>) attributes {dimension_semantics = [#tpu.dimension_semantics<parallel>], iteration_bounds = array<i64: 1>, scalar_prefetch = 0 : i64, scratch_operands = 0 : i64, tpu.core_type = #tpu.core_type<tc>, window_params = [{transform_indices = @transform_0, window_bounds = array<i64: 16, 32>}, {transform_indices = @transform_1, window_bounds = array<i64: 1, 32>}, {transform_indices = @transform_2, window_bounds = array<i64: 1, 32>}, {transform_indices = @transform_3, window_bounds = array<i64: 16, 32>}]} {
    %cst = arith.constant 0.000000e+00 : f32
    %0 = vector.broadcast %cst : f32 to vector<1x32xf32>
    %c0_i32 = arith.constant 0 : i32
    %c16_i32 = arith.constant 16 : i32
    %1 = arith.muli %c0_i32, %c16_i32 : i32
    %2 = tpu.assume_multiple %1, 16 : i32
    %3 = arith.index_cast %2 : i32 to index
    %c0 = arith.constant 0 : index
    %4 = vector.load %arg1[%3, %c0] : memref<16x32xf32, #tpu.memory_space<vmem>>, vector<16x32xf32>
    %cst_0 = arith.constant dense<0.000000e+00> : vector<32xf32>
    %5 = vector.multi_reduction <add>, %4, %cst_0 [0] : vector<16x32xf32> to vector<32xf32>
    %6 = vector.shape_cast %5 : vector<32xf32> to vector<1x32xf32>
    %7 = arith.addf %0, %6 : vector<1x32xf32>
    %c1_i32 = arith.constant 1 : i32
    %cst_1 = arith.constant 6.250000e-02 : f32
    %8 = vector.broadcast %cst_1 : f32 to vector<1x32xf32>
    %9 = arith.mulf %7, %8 : vector<1x32xf32>
    %cst_2 = arith.constant 0.000000e+00 : f32
    %10 = vector.broadcast %cst_2 : f32 to vector<1x32xf32>
    %c0_i32_3 = arith.constant 0 : i32
    %c16_i32_4 = arith.constant 16 : i32
    %11 = arith.muli %c0_i32_3, %c16_i32_4 : i32
    %12 = tpu.assume_multiple %11, 16 : i32
    %13 = arith.index_cast %12 : i32 to index
    %c0_5 = arith.constant 0 : index
    %14 = vector.load %arg1[%13, %c0_5] : memref<16x32xf32, #tpu.memory_space<vmem>>, vector<16x32xf32>
    %15 = vector.broadcast %9 : vector<1x32xf32> to vector<16x32xf32>
    %16 = arith.subf %14, %15 : vector<16x32xf32>
    %17 = arith.mulf %16, %16 : vector<16x32xf32>
    %cst_6 = arith.constant dense<0.000000e+00> : vector<32xf32>
    %18 = vector.multi_reduction <add>, %17, %cst_6 [0] : vector<16x32xf32> to vector<32xf32>
    %19 = vector.shape_cast %18 : vector<32xf32> to vector<1x32xf32>
    %20 = arith.addf %10, %19 : vector<1x32xf32>
    %c1_i32_7 = arith.constant 1 : i32
    %cst_8 = arith.constant 6.250000e-02 : f32
    %21 = vector.broadcast %cst_8 : f32 to vector<1x32xf32>
    %22 = arith.mulf %20, %21 : vector<1x32xf32>
    %cst_9 = arith.constant 9.99999974E-6 : f32
    %23 = vector.broadcast %cst_9 : f32 to vector<1x32xf32>
    %24 = arith.addf %22, %23 : vector<1x32xf32>
    %25 = math.rsqrt %24 : vector<1x32xf32>
    %c0_10 = arith.constant 0 : index
    %c0_11 = arith.constant 0 : index
    %26 = vector.load %arg2[%c0_10, %c0_11] : memref<1x32xf32, #tpu.memory_space<vmem>>, vector<1x32xf32>
    %27 = arith.mulf %26, %25 : vector<1x32xf32>
    %c0_12 = arith.constant 0 : index
    %c0_13 = arith.constant 0 : index
    %28 = vector.load %arg3[%c0_12, %c0_13] : memref<1x32xf32, #tpu.memory_space<vmem>>, vector<1x32xf32>
    %29 = arith.mulf %9, %27 : vector<1x32xf32>
    %30 = arith.subf %28, %29 : vector<1x32xf32>
    %c0_i32_14 = arith.constant 0 : i32
    %c16_i32_15 = arith.constant 16 : i32
    %31 = arith.muli %c0_i32_14, %c16_i32_15 : i32
    %32 = tpu.assume_multiple %31, 16 : i32
    %33 = arith.index_cast %32 : i32 to index
    %c0_16 = arith.constant 0 : index
    %34 = vector.load %arg1[%33, %c0_16] : memref<16x32xf32, #tpu.memory_space<vmem>>, vector<16x32xf32>
    %35 = vector.broadcast %27 : vector<1x32xf32> to vector<16x32xf32>
    %36 = arith.mulf %34, %35 : vector<16x32xf32>
    %37 = vector.broadcast %30 : vector<1x32xf32> to vector<16x32xf32>
    %38 = arith.addf %36, %37 : vector<16x32xf32>
    %39 = arith.index_cast %32 : i32 to index
    %c0_17 = arith.constant 0 : index
    %40 = vector.load %arg4[%39, %c0_17] : memref<16x32xf32, #tpu.memory_space<vmem>>, vector<16x32xf32>
    tpu.vector_store %arg4[%39, %c0_17], %38 {strides = array<i32>} : memref<16x32xf32, #tpu.memory_space<vmem>>, vector<16x32xf32>,
    %c1_i32_18 = arith.constant 1 : i32
    return
  }
  func.func @transform_0(%arg0: i32) -> (i32, i32) {
    %c0_i32 = arith.constant 0 : i32
    %c0_i32_0 = arith.constant 0 : i32
    return %c0_i32, %arg0 : i32, i32
  }
  func.func @transform_1(%arg0: i32) -> (i32, i32) {
    %c0_i32 = arith.constant 0 : i32
    %c0_i32_0 = arith.constant 0 : i32
    return %c0_i32, %arg0 : i32, i32
  }
  func.func @transform_2(%arg0: i32) -> (i32, i32) {
    %c0_i32 = arith.constant 0 : i32
    %c0_i32_0 = arith.constant 0 : i32
    return %c0_i32, %arg0 : i32, i32
  }
  func.func @transform_3(%arg0: i32) -> (i32, i32) {
    %c0_i32 = arith.constant 0 : i32
    %c0_i32_0 = arith.constant 0 : i32
    return %c0_i32, %arg0 : i32, i32
  }
}

</mosaic_0001>

<llo_original>
// kernel: tpu_custom_call.1
$region0: #{tpu_custom_call.1}
  #allocation0 [shape = 'u32[]', space=smem, size = 0x4, offset = 0x4, fixed_abs, tag = 'smem constant byte address 0x4 - core index']
  #allocation1 [shape = 'u32[144,128]{1,0:T(1,128)}', space=vmem, size = 0x12000, scoped, tag = 'internal scratch']
  %s0 = inlined_call_operand.hbm [shape: f32[16,32], index: 0, kind: input, shape index: {}]
  %s1 = inlined_call_operand.vmem [shape: f32[1,32], index: 1, kind: input, shape index: {}]
  %s2 = inlined_call_operand.vmem [shape: f32[1,32], index: 2, kind: input, shape index: {}]
  %s3 = inlined_call_operand.hbm [shape: f32[16,32], index: 3, kind: output, shape index: {}]
  %s4 = sld [smem:[#allocation0]]
  $region26: #{tpu_custom_call.1} parent=0
    _
  %s6 = ssub.s32 1, %s4
  %s7 = scalar_select 0, %s6, %s4
  $region1: #{tpu_custom_call.1} parent=0
    #allocation2 [shape = 'u8[8192]{0}', space=vmem, size = 0x2000, scoped, tag = 'input window, operand 0, single buffered']
    #allocation3 [shape = 's32[1]{0}', space=sflag, size = 0x4, scoped, tag = 'scoped memory for tpu_custom_call.1']
    #allocation4 [shape = 's32[1]{0}', space=sflag, size = 0x4, scoped, tag = 'scoped memory for tpu_custom_call.1']
    #allocation5 [shape = 'u8[8192]{0}', space=vmem, size = 0x2000, scoped, tag = 'output window, operand 0, single buffered']
    %8 = vsyncpa [#allocation3], 0
    %9 = vsyncpa [#allocation4], 0
    // Predicated region
    $region2: #{tpu_custom_call.1} parent=1 // pred_check
      _
    $region3: #{tpu_custom_call.1} parent=1 // pred_check_branch
      %11 = sbr.rel (0) target = $region5
    $region4: #{tpu_custom_call.1} parent=1 // pred_region
      %s13 = ssub.s32 256, 256
      %14 = vsyncadd [#allocation3], %s13
      %s15 = sshll.u32 [#allocation2], 4
      %s16 = int_to_ptr.vmem [resolvable:$true] %s15
      %21 = dma.hbm_to_vmem [thread:$0]  %s0, 256, %s16, [#allocation3], 128, 128, 8
    $region5: #{tpu_custom_call.1} parent=1 // pred_fallthru
      _
    // Predicated region
    $region6: #{tpu_custom_call.1} parent=1 // pred_check
      _
    $region7: #{tpu_custom_call.1} parent=1 // pred_check_branch
      %23 = sbr.rel (0) target = $region9
    $region8: #{tpu_custom_call.1} parent=1 // pred_region
      _
    $region9: #{tpu_custom_call.1} parent=1 // pred_fallthru
      _
    // Predicated region
    $region10: #{tpu_custom_call.1} parent=1 // pred_check
      _
    $region11: #{tpu_custom_call.1} parent=1 // pred_check_branch
      %25 = sbr.rel (0) target = $region13
    $region12: #{tpu_custom_call.1} parent=1 // pred_region
      _
    $region13: #{tpu_custom_call.1} parent=1 // pred_fallthru
      _
    // Predicated region
    $region14: #{tpu_custom_call.1} parent=1 // pred_check
      _
    $region15: #{tpu_custom_call.1} parent=1 // pred_check_branch
      %27 = sbr.rel (0) target = $region17
    $region16: #{tpu_custom_call.1} parent=1 // pred_region
      %28 = dma.done [#allocation3], 256
    $region17: #{tpu_custom_call.1} parent=1 // pred_fallthru
      _
    %v29 = vld [vmem:[#allocation2] sm:$0xff]
    %v30 = vld [vmem:[#allocation2 + $0x8] sm:$0xff]
    %vm31 = vcmask 261120
    %v32 = vsel %vm31, %v29, 0.0
    %v33 = vsel %vm31, %v30, 0.0
    %v34 = vadd.f32 %v32, %v33
    %v35 = vrot.slane %v34, 4
    %v36 = vadd.f32 %v34, %v35
    %v37 = vrot.slane %v36, 2
    %v38 = vadd.f32 %v36, %v37
    %v39 = vrot.slane %v38, 1
    %v40 = vadd.f32 %v38, %v39
    %v41 = vadd.f32 %v40, 0.0
    %v42 = vmul.f32 %v41, 0.0625
    %v43 = vsub.f32 %v29, %v42
    %v44 = vsub.f32 %v30, %v42
    %v45 = vmul.f32 %v43, %v43
    %v46 = vmul.f32 %v44, %v44
    %v47 = vsel %vm31, %v45, 0.0
    %v48 = vsel %vm31, %v46, 0.0
    %v49 = vadd.f32 %v47, %v48
    %v50 = vrot.slane %v49, 4
    %v51 = vadd.f32 %v49, %v50
    %v52 = vrot.slane %v51, 2
    %v53 = vadd.f32 %v51, %v52
    %v54 = vrot.slane %v53, 1
    %v55 = vadd.f32 %v53, %v54
    %v56 = vadd.f32 %v55, 0.0
    %v57 = vmul.f32 %v56, 0.0625
    %v58 = vadd.f32 %v57, 1e-05
    %v59 = vrsqrt.pop %v58
    %v60 = vld [vmem:[%s1] sm:$0x1]
    %v61 = vmul.f32 %v60, %v59
    %v62 = vld [vmem:[%s2] sm:$0x1]
    %v63 = vmul.f32 %v42, %v61
    %v64 = vsub.f32 %v62, %v63
    %v66 = vlaneseq
    %v67 = vshrl.u32 %v66, 7
    %v68 = vsub.s32 0, %v67
    %v69 = vrot.slane %v61, %v68
    %v71 = vmul.f32 %v29, %v69
    %v72 = vmul.f32 %v30, %v69
    %v74 = vlaneseq
    %v75 = vshrl.u32 %v74, 7
    %v76 = vsub.s32 0, %v75
    %v77 = vrot.slane %v64, %v76
    %v79 = vadd.f32 %v71, %v77
    %v80 = vadd.f32 %v72, %v77
    %81 = vst.msk [vmem:[#allocation5] sm:$0xff] %vm31, %v79
    %82 = vst.msk [vmem:[#allocation5 + $0x8] sm:$0xff] %vm31, %v80
    // Predicated region
    $region18: #{tpu_custom_call.1} parent=1 // pred_check
      _
    $region19: #{tpu_custom_call.1} parent=1 // pred_check_branch
      %84 = sbr.rel (0) target = $region21
    $region20: #{tpu_custom_call.1} parent=1 // pred_region
      %s86 = ssub.s32 256, 256
      %87 = vsyncadd [#allocation4], %s86
      %s88 = sshll.u32 [#allocation5], 4
      %s89 = int_to_ptr.vmem [resolvable:$true] %s88
      %94 = dma.vmem_to_hbm [thread:$0]  %s89, 256, %s3, [#allocation4], 128, 128, 8
    $region21: #{tpu_custom_call.1} parent=1 // pred_fallthru
      _
    // Predicated region
    $region22: #{tpu_custom_call.1} parent=1 // pred_check
      _
    $region23: #{tpu_custom_call.1} parent=1 // pred_check_branch
      %96 = sbr.rel (0) target = $region25
    $region24: #{tpu_custom_call.1} parent=1 // pred_region
      %97 = dma.done [#allocation4], 256
    $region25: #{tpu_custom_call.1} parent=1 // pred_fallthru
      _
    %98 = vsyncpa [#allocation3], 1
    %99 = vsyncpa [#allocation4], 1

</llo_original>
